<compile_context>
chip_gen: v7x
topology: tpu7x:2x2x1
jax: 0.10.0
libtpu: 0.0.40
codegen_flags: <defaults>
</compile_context>

<pallas_src>
import functools

import jax
import jax.numpy as jnp
from jax.experimental import pallas as pl
from jax.experimental.pallas import tpu as pltpu


def _row_to_col(row):
    """(1, n) -> (n, 1) without a Mosaic reshape/transpose relayout.

    Broadcast along sublanes (free), mask to the diagonal and lane-reduce.
    n is tiny (num_tokens), so this is a single-vreg VPU/XLU op.
    """
    n = row.shape[-1]
    r = jax.lax.broadcasted_iota(jnp.int32, (n, n), 0)
    c = jax.lax.broadcasted_iota(jnp.int32, (n, n), 1)
    diag = jnp.where(r == c, jnp.broadcast_to(row, (n, n)), 0.0)
    return jnp.sum(diag, axis=1, keepdims=True)


def token_learner_kernel(x_ref, ln_w_ref, ln_b_ref, w1_ref, b1_ref, w2_ref, b2_ref,
                         out_ref, m_ref, l_ref, acc_ref,
                         *, c_true, s_true, needs_smask, bf16_nonlin):
    # x_ref block: (1, TS, C_pad).  Weights / biases are full (resident) blocks.
    s_idx = pl.program_id(1)
    num_s = pl.num_programs(1)
    TS = x_ref.shape[1]

    @pl.when(s_idx == 0)
    def _init():
        m_ref[...] = jnp.full_like(m_ref, -jnp.inf)
        l_ref[...] = jnp.zeros_like(l_ref)
        acc_ref[...] = jnp.zeros_like(acc_ref)

    x = x_ref[0]                                    # (TS, C_pad), original dtype

    if needs_smask:
        # Last chunk may run past S: zero out-of-range rows *before* any arithmetic so
        # garbage from the padded OOB block can never propagate (no NaN/Inf reach math).
        rows = jax.lax.broadcasted_iota(jnp.int32, (TS, 1), 0) + s_idx * TS
        row_valid = rows < s_true                   # (TS, 1)
        x = jnp.where(row_valid, x, jnp.zeros_like(x))

    xf = x.astype(jnp.float32)

    # --- LayerNorm over channels (eps=1e-6, biased variance), single-pass stats, f32 ---
    # Padded channels are zero, so sums are exact; divide by the TRUE channel count.
    inv_c = 1.0 / float(c_true)
    s1 = jnp.sum(xf, axis=-1, keepdims=True)
    s2 = jnp.sum(xf * xf, axis=-1, keepdims=True)
    mean = s1 * inv_c
    var = jnp.maximum(s2 * inv_c - mean * mean, 0.0)
    xn = (xf - mean) * jax.lax.rsqrt(var + 1e-6)
    xn = xn * ln_w_ref[...].astype(jnp.float32) + ln_b_ref[...].astype(jnp.float32)

    # --- MLP: Linear(C->Bn) + GELU(tanh) + Linear(Bn->T), f32 accumulation ---
    h = jnp.dot(xn.astype(w1_ref.dtype), w1_ref[...],
                preferred_element_type=jnp.float32) + b1_ref[...].astype(jnp.float32)
    c0 = 0.7978845608028654  # sqrt(2/pi)
    u = c0 * (h + 0.044715 * h * h * h)
    if bf16_nonlin:
        t = jnp.tanh(u.astype(jnp.bfloat16)).astype(jnp.float32)   # EUP bf16 path (v6e/v7x)
    else:
        t = jnp.tanh(u)
    h = 0.5 * h * (1.0 + t)
    logits = jnp.dot(h.astype(w2_ref.dtype), w2_ref[...],
                     preferred_element_type=jnp.float32) + b2_ref[...].astype(jnp.float32)
    # logits: (TS, T).  Softmax axis is the spatial axis (axis 0) -> online softmax,
    # no (T, S) transpose is ever materialized.

    if needs_smask:
        logits = jnp.where(row_valid, logits, -jnp.inf)

    m_prev = m_ref[...]                                             # (1, T)
    m_new = jnp.maximum(m_prev, jnp.max(logits, axis=0, keepdims=True))
    alpha = jnp.exp(m_prev - m_new)                                 # (1, T)
    z = logits - m_new
    if bf16_nonlin:
        e = jnp.exp(z.astype(jnp.bfloat16)).astype(jnp.float32)    # (TS, T)
    else:
        e = jnp.exp(z)
    l_ref[...] = alpha * l_ref[...] + jnp.sum(e, axis=0, keepdims=True)

    # Unnormalized pooling: contract the spatial axis of e and x -> (T, C_pad).
    pooled = jax.lax.dot_general(e.astype(x.dtype), x,
                                 (((0,), (0,)), ((), ())),
                                 preferred_element_type=jnp.float32)
    acc_ref[...] = _row_to_col(alpha) * acc_ref[...] + pooled
    m_ref[...] = m_new

    @pl.when(s_idx == num_s - 1)
    def _finalize():
        inv_l = 1.0 / l_ref[...]                                    # exact; once per batch elem
        feat = acc_ref[...] * _row_to_col(inv_l)                    # (T, C_pad)
        out_ref[0] = feat.astype(out_ref.dtype)


def _tpu_generation_and_vmem():
    """Best-effort TPU generation / physical-VMEM detection (never raises)."""
    gen = "unknown"
    try:
        kind = jax.devices()[0].device_kind.lower()
        for g, keys in (("v7", ("v7", "tpu7")), ("v6", ("v6", "tpu6")),
                        ("v5", ("v5", "tpu5")), ("v4", ("v4", "tpu4"))):
            if any(k in kind for k in keys):
                gen = g
                break
    except Exception:
        pass
    vmem_default = (64 << 20) if gen in ("v7", "unknown") else (128 << 20)
    try:
        info = pltpu.get_tpu_info()
        vmem = int(getattr(info, "vmem_capacity_bytes", vmem_default))
        if vmem <= 0:
            vmem = vmem_default
    except Exception:
        vmem = vmem_default
    return gen, vmem


def _pick_chunk(S, C, itemsize, sub_tile, cap=None, budget_bytes=8 << 20):
    """Largest sublane-aligned chunk whose x-tile fits a per-buffer VMEM budget.

    Returns (ts, needs_tail_mask).  Prefers divisors of S (no masking); otherwise the
    last chunk is partial and masked in-kernel.
    """
    max_ts = min(S, 1024, max(sub_tile, budget_bytes // max(1, C * itemsize)))
    if cap is not None:
        max_ts = min(max_ts, max(sub_tile, cap))
    max_ts = (max_ts // sub_tile) * sub_tile
    if max_ts <= 0 or max_ts >= S:
        return S, False                     # single full-extent block
    best_div = 0
    for ts in range(sub_tile, max_ts + 1, sub_tile):
        if S % ts == 0:
            best_div = ts
    if best_div >= max(sub_tile, max_ts // 2):
        return best_div, False
    return max_ts, True                     # masked tail chunk


def token_learner_forward(x, params, *, num_tokens, max_chunk=None, weight_dtype=None):
    """x: (B, C, H, W) or (B, S, C). Returns (B, num_tokens, C)."""
    if x.ndim == 4:
        b, c, h, w = x.shape
        x = x.reshape(b, h * w, c)   # raw reshape, same as the PyTorch reference
    B, S, C = x.shape
    ln_w, ln_b, w1, b1, w2, b2 = params
    Bn = w1.shape[1]
    T = num_tokens

    gen, vmem_phys = _tpu_generation_and_vmem()

    # Generation-aware budgets: v4/v5e/v6e have 128 MiB VMEM -> big tiles; v7x has 64 MiB.
    if gen == "v7":
        budget_bytes = 8 << 20
    elif gen in ("v4", "v5", "v6"):
        budget_bytes = 12 << 20
    else:
        budget_bytes = 6 << 20
    vmem_limit = min(int(vmem_phys * 3 // 4), 96 << 20)

    # MXU operand dtype: bf16 weights when the activations are bf16 (f32 accumulate kept).
    if weight_dtype is None:
        weight_dtype = jnp.bfloat16 if x.dtype == jnp.bfloat16 else w1.dtype
    # bf16 transcendentals only where the VPU/EUP have a bf16 path and inputs are bf16.
    bf16_nonlin = (gen in ("v6", "v7")) and x.dtype == jnp.bfloat16

    # --- Lane-dense channels: pad C to a multiple of 128 (no-op for production C). ---
    C_pad = ((C + 127) // 128) * 128
    pad = C_pad - C
    if pad:
        x = jnp.pad(x, ((0, 0), (0, 0), (0, pad)))
        ln_w = jnp.pad(ln_w, (0, pad))
        ln_b = jnp.pad(ln_b, (0, pad))
        w1 = jnp.pad(w1, ((0, pad), (0, 0)))

    # biases / LN params as (1, N) 2-D for clean TPU layouts
    ln_w2 = ln_w.reshape(1, C_pad)
    ln_b2 = ln_b.reshape(1, C_pad)
    b1_2 = b1.reshape(1, Bn).astype(jnp.float32)
    b2_2 = b2.reshape(1, T).astype(jnp.float32)
    w1c = w1.astype(weight_dtype)
    w2c = w2.astype(weight_dtype)

    itemsize = jnp.dtype(x.dtype).itemsize
    sub_tile = {4: 8, 2: 16, 1: 32}.get(itemsize, 8)
    ts, needs_smask = _pick_chunk(S, C_pad, itemsize, sub_tile,
                                  cap=max_chunk, budget_bytes=budget_bytes)
    ns = -(-S // ts)

    # Streamed x spec; 3-deep buffering on v5e to hide the exposed HBM latency tail.
    x_index_map = lambda b, s: (b, s, 0)
    x_spec = pl.BlockSpec((1, ts, C_pad), x_index_map)
    if gen == "v5":
        try:
            x_spec = pl.BlockSpec((1, ts, C_pad), x_index_map,
                                  pipeline_mode=pl.Buffered(3))
        except TypeError:
            x_spec = pl.BlockSpec((1, ts, C_pad), x_index_map)

    kernel = functools.partial(token_learner_kernel,
                               c_true=C, s_true=S,
                               needs_smask=needs_smask, bf16_nonlin=bf16_nonlin)

    out = pl.pallas_call(
        kernel,
        out_shape=jax.ShapeDtypeStruct((B, T, C_pad), x.dtype),
        grid_spec=pltpu.PrefetchScalarGridSpec(
            num_scalar_prefetch=0,
            grid=(B, ns),                         # batch parallel, S streamed (reduction last)
            in_specs=[
                x_spec,                                               # x (streamed tile)
                pl.BlockSpec((1, C_pad), lambda b, s: (0, 0)),        # ln weight
                pl.BlockSpec((1, C_pad), lambda b, s: (0, 0)),        # ln bias
                pl.BlockSpec((C_pad, Bn), lambda b, s: (0, 0)),       # W1
                pl.BlockSpec((1, Bn), lambda b, s: (0, 0)),           # b1
                pl.BlockSpec((Bn, T), lambda b, s: (0, 0)),           # W2
                pl.BlockSpec((1, T), lambda b, s: (0, 0)),            # b2
            ],
            out_specs=pl.BlockSpec((1, T, C_pad), lambda b, s: (b, 0, 0)),
            scratch_shapes=[
                pltpu.VMEM((1, T), jnp.float32),      # running max  m
                pltpu.VMEM((1, T), jnp.float32),      # running sum  l
                pltpu.VMEM((T, C_pad), jnp.float32),  # unnormalized pooled accumulator
            ],
        ),
        compiler_params=pltpu.CompilerParams(
            dimension_semantics=("parallel", "arbitrary"),
            vmem_limit_bytes=vmem_limit,
        ),
    )(x, ln_w2, ln_b2, w1c, b1_2, w2c, b2_2)

    if pad:
        out = out[:, :, :C]
    return out


def init_params(key, in_dim, bottleneck_dim, num_tokens):
    """Deterministic init mimicking the module's __init__ (Linear weights stored (in, out))."""
    k1, k2, k3, k4 = jax.random.split(key, 4)

    def xavier(k, fan_in, fan_out):
        limit = (6.0 / (fan_in + fan_out)) ** 0.5
        return jax.random.uniform(k, (fan_in, fan_out), jnp.float32, -limit, limit)

    ln_w = jnp.ones((in_dim,), jnp.float32)
    ln_b = jnp.zeros((in_dim,), jnp.float32)
    w1 = xavier(k1, in_dim, bottleneck_dim)
    b1 = 1e-6 * jax.random.normal(k2, (bottleneck_dim,), jnp.float32)
    w2 = xavier(k3, bottleneck_dim, num_tokens)
    b2 = 1e-6 * jax.random.normal(k4, (num_tokens,), jnp.float32)
    return (ln_w, ln_b, w1, b1, w2, b2)


def reference_forward(x, params, *, num_tokens):
    """Pure-JAX reference for correctness checking."""
    if x.ndim == 4:
        b, c, h, w = x.shape
        x = x.reshape(b, h * w, c)
    x = x.astype(jnp.float32)
    ln_w, ln_b, w1, b1, w2, b2 = params
    mean = jnp.mean(x, axis=-1, keepdims=True)
    var = jnp.mean((x - mean) ** 2, axis=-1, keepdims=True)
    xn = (x - mean) / jnp.sqrt(var + 1e-6) * ln_w + ln_b
    h = xn @ w1 + b1
    h = 0.5 * h * (1.0 + jnp.tanh(0.7978845608028654 * (h + 0.044715 * h ** 3)))
    logits = h @ w2 + b2
    a = jnp.swapaxes(logits, 2, 1)
    p = jax.nn.softmax(a, axis=-1)
    return jnp.einsum("bsi,bid->bsd", p, x)


if __name__ == "__main__":
    # small, module-consistent shapes: in_dim = channels = 16, S = 16*16 = 256
    batch, channels, H, W = 2, 16, 16, 16
    bottleneck_dim, num_tokens = 32, 8

    key = jax.random.PRNGKey(0)
    kx, kp = jax.random.split(key)
    x = jax.random.normal(kx, (batch, channels, H, W), jnp.float32)
    params = init_params(kp, channels, bottleneck_dim, num_tokens)

    # 1) f32 path: max_chunk=64 -> 4 streamed S-chunks, exercising online-softmax
    #    init / accumulate / finalize.
    feat = token_learner_forward(x, params, num_tokens=num_tokens, max_chunk=64)
    feat = jax.block_until_ready(feat)
    ref = reference_forward(x, params, num_tokens=num_tokens)
    assert feat.shape == (batch, num_tokens, channels)
    assert jnp.allclose(feat, ref, atol=1e-3, rtol=1e-3), "f32 mismatch vs reference"

    # 2) Ragged spatial extent (S = 255 not divisible by the chunk) -> masked tail chunk.
    x3 = jax.random.normal(jax.random.PRNGKey(1), (batch, 255, channels), jnp.float32)
    feat3 = token_learner_forward(x3, params, num_tokens=num_tokens, max_chunk=64)
    feat3 = jax.block_until_ready(feat3)
    ref3 = reference_forward(x3, params, num_tokens=num_tokens)
    assert jnp.allclose(feat3, ref3, atol=1e-3, rtol=1e-3), "tail-mask mismatch vs reference"

    # 3) bf16 path: bf16 inputs + bf16 MXU weights (+ bf16 transcendentals on v6e/v7x).
    x_bf = x.astype(jnp.bfloat16)
    feat_bf = token_learner_forward(x_bf, params, num_tokens=num_tokens, max_chunk=64)
    feat_bf = jax.block_until_ready(feat_bf)
    assert feat_bf.shape == (batch, num_tokens, channels)
    assert bool(jnp.all(jnp.isfinite(feat_bf.astype(jnp.float32))))
    assert jnp.allclose(feat_bf.astype(jnp.float32), ref, atol=1e-1, rtol=1e-1), \
        "bf16 mismatch vs reference"

    print("KERNEL_OK")
</pallas_src>

<mosaic_0001>
module attributes {stable_mosaic.version = 11 : i64} {
  func.func @token_learner_kernel(%arg0: i32, %arg1: i32, %arg2: memref<1x64x128xf32, #tpu.memory_space<vmem>>, %arg3: memref<1x128xf32, #tpu.memory_space<vmem>>, %arg4: memref<1x128xf32, #tpu.memory_space<vmem>>, %arg5: memref<128x32xf32, #tpu.memory_space<vmem>>, %arg6: memref<1x32xf32, #tpu.memory_space<vmem>>, %arg7: memref<32x8xf32, #tpu.memory_space<vmem>>, %arg8: memref<1x8xf32, #tpu.memory_space<vmem>>, %arg9: memref<1x8x128xf32, #tpu.memory_space<vmem>>, %arg10: memref<1x8xf32, #tpu.memory_space<vmem>>, %arg11: memref<1x8xf32, #tpu.memory_space<vmem>>, %arg12: memref<8x128xf32, #tpu.memory_space<vmem>>) attributes {dimension_semantics = [#tpu.dimension_semantics<parallel>, #tpu.dimension_semantics<arbitrary>], iteration_bounds = array<i64: 2, 4>, scalar_prefetch = 0 : i64, scratch_operands = 3 : i64, tpu.core_type = #tpu.core_type<tc>, window_params = [{transform_indices = @transform_0, window_bounds = array<i64: 1, 64, 128>}, {pipeline_mode = #tpu.pipeline_mode<synchronous>, transform_indices = @transform_1, window_bounds = array<i64: 1, 128>}, {pipeline_mode = #tpu.pipeline_mode<synchronous>, transform_indices = @transform_2, window_bounds = array<i64: 1, 128>}, {pipeline_mode = #tpu.pipeline_mode<synchronous>, transform_indices = @transform_3, window_bounds = array<i64: 128, 32>}, {pipeline_mode = #tpu.pipeline_mode<synchronous>, transform_indices = @transform_4, window_bounds = array<i64: 1, 32>}, {pipeline_mode = #tpu.pipeline_mode<synchronous>, transform_indices = @transform_5, window_bounds = array<i64: 32, 8>}, {pipeline_mode = #tpu.pipeline_mode<synchronous>, transform_indices = @transform_6, window_bounds = array<i64: 1, 8>}, {transform_indices = @transform_7, window_bounds = array<i64: 1, 8, 128>}]} {
    %c0_i32 = arith.constant 0 : i32
    %0 = arith.cmpi eq, %arg1, %c0_i32 : i32
    %1 = arith.extui %0 : i1 to i32
    %c0_i32_0 = arith.constant 0 : i32
    %2 = arith.cmpi ne, %1, %c0_i32_0 : i32
    scf.if %2 {
      %cst_44 = arith.constant 0xFF800000 : f32
      %88 = vector.broadcast %cst_44 : f32 to vector<1x8xf32>
      %c0_45 = arith.constant 0 : index
      %c0_46 = arith.constant 0 : index
      %89 = vector.load %arg10[%c0_45, %c0_46] : memref<1x8xf32, #tpu.memory_space<vmem>>, vector<1x8xf32>
      tpu.vector_store %arg10[%c0_45, %c0_46], %88 {strides = array<i32>} : memref<1x8xf32, #tpu.memory_space<vmem>>, vector<1x8xf32>,
      %cst_47 = arith.constant 0.000000e+00 : f32
      %90 = vector.broadcast %cst_47 : f32 to vector<1x8xf32>
      %c0_48 = arith.constant 0 : index
      %c0_49 = arith.constant 0 : index
      %91 = vector.load %arg11[%c0_48, %c0_49] : memref<1x8xf32, #tpu.memory_space<vmem>>, vector<1x8xf32>
      tpu.vector_store %arg11[%c0_48, %c0_49], %90 {strides = array<i32>} : memref<1x8xf32, #tpu.memory_space<vmem>>, vector<1x8xf32>,
      %cst_50 = arith.constant 0.000000e+00 : f32
      %92 = vector.broadcast %cst_50 : f32 to vector<8x128xf32>
      %c0_51 = arith.constant 0 : index
      %c0_52 = arith.constant 0 : index
      %93 = vector.load %arg12[%c0_51, %c0_52] : memref<8x128xf32, #tpu.memory_space<vmem>>, vector<8x128xf32>
      tpu.vector_store %arg12[%c0_51, %c0_52], %92 {strides = array<i32>} : memref<8x128xf32, #tpu.memory_space<vmem>>, vector<8x128xf32>,
    } else {
    }
    %c0 = arith.constant 0 : index
    %c0_1 = arith.constant 0 : index
    %c0_2 = arith.constant 0 : index
    %3 = vector.load %arg2[%c0, %c0_1, %c0_2] : memref<1x64x128xf32, #tpu.memory_space<vmem>>, vector<1x64x128xf32>
    %4 = vector.shape_cast %3 : vector<1x64x128xf32> to vector<64x128xf32>
    %cst = arith.constant dense<0.000000e+00> : vector<64xf32>
    %5 = vector.multi_reduction <add>, %4, %cst [1] : vector<64x128xf32> to vector<64xf32>
    %6 = vector.shape_cast %5 : vector<64xf32> to vector<64x1xf32>
    %7 = arith.mulf %4, %4 : vector<64x128xf32>
    %cst_3 = arith.constant dense<0.000000e+00> : vector<64xf32>
    %8 = vector.multi_reduction <add>, %7, %cst_3 [1] : vector<64x128xf32> to vector<64xf32>
    %9 = vector.shape_cast %8 : vector<64xf32> to vector<64x1xf32>
    %cst_4 = arith.constant 6.250000e-02 : f32
    %10 = vector.broadcast %cst_4 : f32 to vector<64x1xf32>
    %11 = arith.mulf %6, %10 : vector<64x1xf32>
    %cst_5 = arith.constant 6.250000e-02 : f32
    %12 = vector.broadcast %cst_5 : f32 to vector<64x1xf32>
    %13 = arith.mulf %9, %12 : vector<64x1xf32>
    %14 = arith.mulf %11, %11 : vector<64x1xf32>
    %15 = arith.subf %13, %14 : vector<64x1xf32>
    %cst_6 = arith.constant 0.000000e+00 : f32
    %16 = vector.broadcast %cst_6 : f32 to vector<64x1xf32>
    %17 = arith.maximumf %15, %16 : vector<64x1xf32>
    %18 = vector.broadcast %11 : vector<64x1xf32> to vector<64x128xf32>
    %19 = arith.subf %4, %18 : vector<64x128xf32>
    %cst_7 = arith.constant 9.99999997E-7 : f32
    %20 = vector.broadcast %cst_7 : f32 to vector<64x1xf32>
    %21 = arith.addf %17, %20 : vector<64x1xf32>
    %22 = math.rsqrt %21 : vector<64x1xf32>
    %23 = vector.broadcast %22 : vector<64x1xf32> to vector<64x128xf32>
    %24 = arith.mulf %19, %23 : vector<64x128xf32>
    %c0_8 = arith.constant 0 : index
    %c0_9 = arith.constant 0 : index
    %25 = vector.load %arg3[%c0_8, %c0_9] : memref<1x128xf32, #tpu.memory_space<vmem>>, vector<1x128xf32>
    %26 = vector.broadcast %25 : vector<1x128xf32> to vector<64x128xf32>
    %27 = arith.mulf %24, %26 : vector<64x128xf32>
    %c0_10 = arith.constant 0 : index
    %c0_11 = arith.constant 0 : index
    %28 = vector.load %arg4[%c0_10, %c0_11] : memref<1x128xf32, #tpu.memory_space<vmem>>, vector<1x128xf32>
    %29 = vector.broadcast %28 : vector<1x128xf32> to vector<64x128xf32>
    %30 = arith.addf %27, %29 : vector<64x128xf32>
    %c0_12 = arith.constant 0 : index
    %c0_13 = arith.constant 0 : index
    %31 = vector.load %arg5[%c0_12, %c0_13] : memref<128x32xf32, #tpu.memory_space<vmem>>, vector<128x32xf32>
    %cst_14 = arith.constant dense<0.000000e+00> : vector<64x32xf32>
    %32 = tpu.matmul %30, %31, %cst_14 {dimension_numbers = #tpu.dot_dimension_numbers<[1], [0], [0], [1], [0, 0, 1, 1], [], []>} : vector<64x128xf32>, vector<128x32xf32>, vector<64x32xf32> -> vector<64x32xf32>
    %c0_15 = arith.constant 0 : index
    %c0_16 = arith.constant 0 : index
    %33 = vector.load %arg6[%c0_15, %c0_16] : memref<1x32xf32, #tpu.memory_space<vmem>>, vector<1x32xf32>
    %34 = vector.broadcast %33 : vector<1x32xf32> to vector<64x32xf32>
    %35 = arith.addf %32, %34 : vector<64x32xf32>
    %cst_17 = arith.constant 4.471500e-02 : f32
    %36 = vector.broadcast %cst_17 : f32 to vector<64x32xf32>
    %37 = arith.mulf %36, %35 : vector<64x32xf32>
    %38 = arith.mulf %37, %35 : vector<64x32xf32>
    %39 = arith.mulf %38, %35 : vector<64x32xf32>
    %40 = arith.addf %35, %39 : vector<64x32xf32>
    %cst_18 = arith.constant 0.797884583 : f32
    %41 = vector.broadcast %cst_18 : f32 to vector<64x32xf32>
    %42 = arith.mulf %41, %40 : vector<64x32xf32>
    %43 = math.tanh %42 : vector<64x32xf32>
    %cst_19 = arith.constant 5.000000e-01 : f32
    %44 = vector.broadcast %cst_19 : f32 to vector<64x32xf32>
    %45 = arith.mulf %44, %35 : vector<64x32xf32>
    %cst_20 = arith.constant 1.000000e+00 : f32
    %46 = vector.broadcast %cst_20 : f32 to vector<64x32xf32>
    %47 = arith.addf %46, %43 : vector<64x32xf32>
    %48 = arith.mulf %45, %47 : vector<64x32xf32>
    %c0_21 = arith.constant 0 : index
    %c0_22 = arith.constant 0 : index
    %49 = vector.load %arg7[%c0_21, %c0_22] : memref<32x8xf32, #tpu.memory_space<vmem>>, vector<32x8xf32>
    %cst_23 = arith.constant dense<0.000000e+00> : vector<64x8xf32>
    %50 = tpu.matmul %48, %49, %cst_23 {dimension_numbers = #tpu.dot_dimension_numbers<[1], [0], [0], [1], [0, 0, 1, 1], [], []>} : vector<64x32xf32>, vector<32x8xf32>, vector<64x8xf32> -> vector<64x8xf32>
    %c0_24 = arith.constant 0 : index
    %c0_25 = arith.constant 0 : index
    %51 = vector.load %arg8[%c0_24, %c0_25] : memref<1x8xf32, #tpu.memory_space<vmem>>, vector<1x8xf32>
    %52 = vector.broadcast %51 : vector<1x8xf32> to vector<64x8xf32>
    %53 = arith.addf %50, %52 : vector<64x8xf32>
    %c0_26 = arith.constant 0 : index
    %c0_27 = arith.constant 0 : index
    %54 = vector.load %arg10[%c0_26, %c0_27] : memref<1x8xf32, #tpu.memory_space<vmem>>, vector<1x8xf32>
    %cst_28 = arith.constant dense<0xFF800000> : vector<8xf32>
    %55 = vector.multi_reduction <maximumf>, %53, %cst_28 [0] : vector<64x8xf32> to vector<8xf32>
    %56 = vector.shape_cast %55 : vector<8xf32> to vector<1x8xf32>
    %57 = arith.maximumf %54, %56 : vector<1x8xf32>
    %58 = arith.subf %54, %57 : vector<1x8xf32>
    %59 = math.exp %58 : vector<1x8xf32>
    %60 = vector.broadcast %57 : vector<1x8xf32> to vector<64x8xf32>
    %61 = arith.subf %53, %60 : vector<64x8xf32>
    %62 = math.exp %61 : vector<64x8xf32>
    %c0_29 = arith.constant 0 : index
    %c0_30 = arith.constant 0 : index
    %63 = vector.load %arg11[%c0_29, %c0_30] : memref<1x8xf32, #tpu.memory_space<vmem>>, vector<1x8xf32>
    %64 = arith.mulf %59, %63 : vector<1x8xf32>
    %cst_31 = arith.constant dense<0.000000e+00> : vector<8xf32>
    %65 = vector.multi_reduction <add>, %62, %cst_31 [0] : vector<64x8xf32> to vector<8xf32>
    %66 = vector.shape_cast %65 : vector<8xf32> to vector<1x8xf32>
    %67 = arith.addf %64, %66 : vector<1x8xf32>
    %c0_32 = arith.constant 0 : index
    %c0_33 = arith.constant 0 : index
    %68 = vector.load %arg11[%c0_32, %c0_33] : memref<1x8xf32, #tpu.memory_space<vmem>>, vector<1x8xf32>
    tpu.vector_store %arg11[%c0_32, %c0_33], %67 {strides = array<i32>} : memref<1x8xf32, #tpu.memory_space<vmem>>, vector<1x8xf32>,
    %cst_34 = arith.constant dense<0.000000e+00> : vector<8x128xf32>
    %69 = tpu.matmul %62, %4, %cst_34 {dimension_numbers = #tpu.dot_dimension_numbers<[0], [0], [1], [1], [0, 1, 1, 1], [], []>} : vector<64x8xf32>, vector<64x128xf32>, vector<8x128xf32> -> vector<8x128xf32>
    %70 = tpu.iota {dimensions = array<i32: 0>} : vector<8x8xi32>
    %71 = tpu.iota {dimensions = array<i32: 1>} : vector<8x8xi32>
    %72 = arith.cmpi eq, %70, %71 : vector<8x8xi32>
    %73 = vector.shape_cast %59 : vector<1x8xf32> to vector<1x8xf32>
    %74 = vector.broadcast %73 : vector<1x8xf32> to vector<8x8xf32>
    %cst_35 = arith.constant 0.000000e+00 : f32
    %75 = vector.broadcast %cst_35 : f32 to vector<8x8xf32>
    %76 = arith.select %72, %74, %75 : vector<8x8xi1>, vector<8x8xf32>
    %cst_36 = arith.constant dense<0.000000e+00> : vector<8xf32>
    %77 = vector.multi_reduction <add>, %76, %cst_36 [1] : vector<8x8xf32> to vector<8xf32>
    %78 = vector.shape_cast %77 : vector<8xf32> to vector<8x1xf32>
    %c0_37 = arith.constant 0 : index
    %c0_38 = arith.constant 0 : index
    %79 = vector.load %arg12[%c0_37, %c0_38] : memref<8x128xf32, #tpu.memory_space<vmem>>, vector<8x128xf32>
    %80 = vector.broadcast %78 : vector<8x1xf32> to vector<8x128xf32>
    %81 = arith.mulf %80, %79 : vector<8x128xf32>
    %82 = arith.addf %81, %69 : vector<8x128xf32>
    %c0_39 = arith.constant 0 : index
    %c0_40 = arith.constant 0 : index
    %83 = vector.load %arg12[%c0_39, %c0_40] : memref<8x128xf32, #tpu.memory_space<vmem>>, vector<8x128xf32>
    tpu.vector_store %arg12[%c0_39, %c0_40], %82 {strides = array<i32>} : memref<8x128xf32, #tpu.memory_space<vmem>>, vector<8x128xf32>,
    %c0_41 = arith.constant 0 : index
    %c0_42 = arith.constant 0 : index
    %84 = vector.load %arg10[%c0_41, %c0_42] : memref<1x8xf32, #tpu.memory_space<vmem>>, vector<1x8xf32>
    tpu.vector_store %arg10[%c0_41, %c0_42], %57 {strides = array<i32>} : memref<1x8xf32, #tpu.memory_space<vmem>>, vector<1x8xf32>,
    %c3_i32 = arith.constant 3 : i32
    %85 = arith.cmpi eq, %arg1, %c3_i32 : i32
    %86 = arith.extui %85 : i1 to i32
    %c0_i32_43 = arith.constant 0 : i32
    %87 = arith.cmpi ne, %86, %c0_i32_43 : i32
    scf.if %87 {
      %c0_44 = arith.constant 0 : index
      %c0_45 = arith.constant 0 : index
      %88 = vector.load %arg11[%c0_44, %c0_45] : memref<1x8xf32, #tpu.memory_space<vmem>>, vector<1x8xf32>
      %cst_46 = arith.constant 1.000000e+00 : f32
      %89 = vector.broadcast %cst_46 : f32 to vector<1x8xf32>
      %90 = arith.divf %89, %88 : vector<1x8xf32>
      %c0_47 = arith.constant 0 : index
      %c0_48 = arith.constant 0 : index
      %91 = vector.load %arg12[%c0_47, %c0_48] : memref<8x128xf32, #tpu.memory_space<vmem>>, vector<8x128xf32>
      %92 = tpu.iota {dimensions = array<i32: 0>} : vector<8x8xi32>
      %93 = tpu.iota {dimensions = array<i32: 1>} : vector<8x8xi32>
      %94 = arith.cmpi eq, %92, %93 : vector<8x8xi32>
      %95 = vector.shape_cast %90 : vector<1x8xf32> to vector<1x8xf32>
      %96 = vector.broadcast %95 : vector<1x8xf32> to vector<8x8xf32>
      %cst_49 = arith.constant 0.000000e+00 : f32
      %97 = vector.broadcast %cst_49 : f32 to vector<8x8xf32>
      %98 = arith.select %94, %96, %97 : vector<8x8xi1>, vector<8x8xf32>
      %cst_50 = arith.constant dense<0.000000e+00> : vector<8xf32>
      %99 = vector.multi_reduction <add>, %98, %cst_50 [1] : vector<8x8xf32> to vector<8xf32>
      %100 = vector.shape_cast %99 : vector<8xf32> to vector<8x1xf32>
      %101 = vector.broadcast %100 : vector<8x1xf32> to vector<8x128xf32>
      %102 = arith.mulf %91, %101 : vector<8x128xf32>
      %c0_51 = arith.constant 0 : index
      %c0_52 = arith.constant 0 : index
      %c0_53 = arith.constant 0 : index
      %103 = vector.load %arg9[%c0_51, %c0_52, %c0_53] : memref<1x8x128xf32, #tpu.memory_space<vmem>>, vector<1x8x128xf32>
      %104 = vector.shape_cast %103 : vector<1x8x128xf32> to vector<8x128xf32>
      %105 = vector.shape_cast %102 : vector<8x128xf32> to vector<1x8x128xf32>
      tpu.vector_store %arg9[%c0_51, %c0_52, %c0_53], %105 {strides = array<i32>} : memref<1x8x128xf32, #tpu.memory_space<vmem>>, vector<1x8x128xf32>,
    } else {
    }
    return
  }
  func.func @transform_0(%arg0: i32, %arg1: i32) -> (i32, i32, i32) {
    %c0_i32 = arith.constant 0 : i32
    %c0_i32_0 = arith.constant 0 : i32
    return %arg0, %arg1, %c0_i32 : i32, i32, i32
  }
  func.func @transform_1(%arg0: i32, %arg1: i32) -> (i32, i32) {
    %c0_i32 = arith.constant 0 : i32
    %c0_i32_0 = arith.constant 0 : i32
    %c0_i32_1 = arith.constant 0 : i32
    return %c0_i32, %c0_i32_0 : i32, i32
  }
  func.func @transform_2(%arg0: i32, %arg1: i32) -> (i32, i32) {
    %c0_i32 = arith.constant 0 : i32
    %c0_i32_0 = arith.constant 0 : i32
    %c0_i32_1 = arith.constant 0 : i32
    return %c0_i32, %c0_i32_0 : i32, i32
  }
  func.func @transform_3(%arg0: i32, %arg1: i32) -> (i32, i32) {
    %c0_i32 = arith.constant 0 : i32
    %c0_i32_0 = arith.constant 0 : i32
    %c0_i32_1 = arith.constant 0 : i32
    return %c0_i32, %c0_i32_0 : i32, i32
  }
  func.func @transform_4(%arg0: i32, %arg1: i32) -> (i32, i32) {
    %c0_i32 = arith.constant 0 : i32
    %c0_i32_0 = arith.constant 0 : i32
    %c0_i32_1 = arith.constant 0 : i32
    return %c0_i32, %c0_i32_0 : i32, i32
  }
  func.func @transform_5(%arg0: i32, %arg1: i32) -> (i32, i32) {
    %c0_i32 = arith.constant 0 : i32
    %c0_i32_0 = arith.constant 0 : i32
    %c0_i32_1 = arith.constant 0 : i32
    return %c0_i32, %c0_i32_0 : i32, i32
  }
  func.func @transform_6(%arg0: i32, %arg1: i32) -> (i32, i32) {
    %c0_i32 = arith.constant 0 : i32
    %c0_i32_0 = arith.constant 0 : i32
    %c0_i32_1 = arith.constant 0 : i32
    return %c0_i32, %c0_i32_0 : i32, i32
  }
  func.func @transform_7(%arg0: i32, %arg1: i32) -> (i32, i32, i32) {
    %c0_i32 = arith.constant 0 : i32
    %c0_i32_0 = arith.constant 0 : i32
    %c0_i32_1 = arith.constant 0 : i32
    return %arg0, %c0_i32, %c0_i32_0 : i32, i32, i32
  }
}

</mosaic_0001>

<llo_original>
// kernel: tpu_custom_call.1
$region0: #{tpu_custom_call.1}
  #allocation0 [shape = 'u32[]', space=smem, size = 0x4, offset = 0x4, fixed_abs, tag = 'smem constant byte address 0x4 - core index']
  #allocation1 [shape = 'u32[144,128]{1,0:T(1,128)}', space=vmem, size = 0x12000, scoped, tag = 'internal scratch']
  #allocation2 [shape = 'f32[1,8]{1,0:T(1,128)}', space=vmem, size = 0x200, scoped, tag = 'scratch operand']
  #allocation3 [shape = 'f32[1,8]{1,0:T(1,128)}', space=vmem, size = 0x200, scoped, tag = 'scratch operand']
  #allocation4 [shape = 'f32[8,128]{1,0:T(8,128)}', space=vmem, size = 0x1000, scoped, tag = 'scratch operand']
  %s0 = inlined_call_operand.hbm [shape: f32[2,256,128], index: 0, kind: input, shape index: {}]
  %s1 = inlined_call_operand.vmem [shape: f32[1,128], index: 1, kind: input, shape index: {}]
  %s2 = inlined_call_operand.vmem [shape: f32[1,128], index: 2, kind: input, shape index: {}]
  %s3 = inlined_call_operand.vmem [shape: f32[128,32], index: 3, kind: input, shape index: {}]
  %s4 = inlined_call_operand.vmem [shape: f32[1,32], index: 4, kind: input, shape index: {}]
  %s5 = inlined_call_operand.vmem [shape: f32[32,8], index: 5, kind: input, shape index: {}]
  %s6 = inlined_call_operand.vmem [shape: f32[1,8], index: 6, kind: input, shape index: {}]
  %s7 = inlined_call_operand.hbm [shape: f32[2,8,128], index: 7, kind: output, shape index: {}]
  %s8 = sld [smem:[#allocation0]]
  $region73: #{tpu_custom_call.1} parent=0
    _
  %s10 = ssub.s32 1, %s8
  %s11 = scalar_select 0, %s10, %s8
  $region1: #{tpu_custom_call.1} parent=0
    #allocation5 [shape = 'u8[65536]{0}', space=vmem, size = 0x10000, scoped, tag = 'input window, operand 0']
    #allocation6 [shape = 's32[2]{0}', space=sflag, size = 0x8, scoped, tag = 'scoped memory for tpu_custom_call.1']
    #allocation7 [shape = 's32[2]{0}', space=sflag, size = 0x8, scoped, tag = 'scoped memory for tpu_custom_call.1']
    #allocation8 [shape = 'u8[8192]{0}', space=vmem, size = 0x2000, scoped, tag = 'output window, operand 0']
    %12 = vsyncpa [#allocation6], 0
    %s13 = scalar_lea.sflag [#allocation6], 1
    %14 = vsyncpa %s13, 0
    %15 = vsyncpa [#allocation7], 0
    %s16 = scalar_lea.sflag [#allocation7], 1
    %17 = vsyncpa %s16, 0
    loop: start=0, step=1, limit=10
    $region2: #{tpu_custom_call.1} parent=1 // loop_pre_header
      _
    $region3: #{tpu_custom_call.1} parent=1 // loop_header
      %s19 = sphi 0, %s23
      %p20 = scmp.ge.s32.totalorder %s19, 10
      %s26 = sphi 0, %s38
      %s27 = sphi 0, %s34
      %s28 = sphi 0, %s26
      %s29 = sphi 0, %s27
      %s30 = sphi 0, %s28
      %s31 = sphi 0, %s29
      %s43 = sphi 0, %s45
      %s46 = sphi 0, %s43
      %s47 = sphi 0, %s46
      %s63 = sphi 0, %s47
      %s67 = sphi 0, %s67
      %s69 = sphi 0, %s67
      %s70 = sphi 0, %s69
      %s84 = sphi 0, %s70
      %s88 = sphi 0, %s88
      %s90 = sphi 0, %s88
      %s91 = sphi 0, %s90
      %s105 = sphi 0, %s91
      %s109 = sphi 0, %s109
      %s111 = sphi 0, %s109
      %s112 = sphi 0, %s111
      %s126 = sphi 0, %s112
      %s130 = sphi 0, %s130
      %s132 = sphi 0, %s130
      %s133 = sphi 0, %s132
      %s147 = sphi 0, %s133
      %s151 = sphi 0, %s151
      %s153 = sphi 0, %s151
      %s154 = sphi 0, %s153
      %s168 = sphi 0, %s154
      %s172 = sphi 0, %s172
      %s174 = sphi 0, %s172
      %s175 = sphi 0, %s174
      %s189 = sphi 0, %s175
      %s195 = sphi 0, %s197
      %s198 = sphi 0, %s195
      %s199 = sphi 0, %s198
      %s215 = sphi 0, %s199
    $region4: #{tpu_custom_call.1} parent=1 // loop_header_branch
      %22 = sbr.rel (%p20) target = $region8
    $region5: #{tpu_custom_call.1} parent=1 // loop_body
      %s24 = ssub.s32 %s19, 1
      %s25 = ssub.s32 %s19, 2
      %s32 = sadd.s32 1, %s27
      %p33 = scmp.ge.s32.totalorder %s32, 4
      %s34 = scalar_select %p33, 0, %s32
      %s35 = sadd.s32 1, %s26
      %s36 = scalar_select %p33, %s35, %s26
      %p37 = scmp.ge.s32.totalorder %s36, 2
      %s38 = scalar_select %p37, 0, %s36
      %s39 = ssub.s32 %s26, %s38
      %s40 = ssub.s32 %s27, %s34
      %s41 = sor.u32 %s39, %s40
      %p42 = scmp.eq.s32.totalorder %s41, 0
      %s44 = sadd.s32 %s43, 1
      %s45 = scalar_select %p42, %s43, %s44
      %p48 = pneg %p42
      %p49 = scmp.eq.s32.totalorder %s19, 7
      %p50 = por %p48, %p49
      %p51 = scmp.ne.s32.totalorder %s43, %s46
      %p52 = scmp.eq.s32.totalorder %s19, 0
      %p53 = por %p51, %p52
      %p54 = scmp.ne.s32.totalorder %s43, %s46
      %p55 = scmp.eq.s32.totalorder %s24, 7
      %p56 = por %p54, %p55
      %p57 = scmp.ne.s32.totalorder %s46, %s47
      %p58 = scmp.eq.s32.totalorder %s24, 0
      %p59 = por %p57, %p58
      %p60 = scmp.ne.s32.totalorder %s46, %s47
      %p61 = scmp.eq.s32.totalorder %s25, 7
      %p62 = por %p60, %p61
      %p64 = scmp.ne.s32.totalorder %s47, %s63
      %p65 = scmp.eq.s32.totalorder %s25, 0
      %p66 = por %p64, %p65
      %s68 = sadd.s32 %s67, 1
      %p71 = scmp.eq.s32.totalorder %s19, 7
      %p72 = scmp.ne.s32.totalorder %s67, %s69
      %p73 = scmp.eq.s32.totalorder %s19, 0
      %p74 = por %p72, %p73
      %p75 = scmp.ne.s32.totalorder %s67, %s69
      %p76 = scmp.eq.s32.totalorder %s24, 7
      %p77 = por %p75, %p76
      %p78 = scmp.ne.s32.totalorder %s69, %s70
      %p79 = scmp.eq.s32.totalorder %s24, 0
      %p80 = por %p78, %p79
      %p81 = scmp.ne.s32.totalorder %s69, %s70
      %p82 = scmp.eq.s32.totalorder %s25, 7
      %p83 = por %p81, %p82
      %p85 = scmp.ne.s32.totalorder %s70, %s84
      %p86 = scmp.eq.s32.totalorder %s25, 0
      %p87 = por %p85, %p86
      %s89 = sadd.s32 %s88, 1
      %p92 = scmp.eq.s32.totalorder %s19, 7
      %p93 = scmp.ne.s32.totalorder %s88, %s90
      %p94 = scmp.eq.s32.totalorder %s19, 0
      %p95 = por %p93, %p94
      %p96 = scmp.ne.s32.totalorder %s88, %s90
      %p97 = scmp.eq.s32.totalorder %s24, 7
      %p98 = por %p96, %p97
      %p99 = scmp.ne.s32.totalorder %s90, %s91
      %p100 = scmp.eq.s32.totalorder %s24, 0
      %p101 = por %p99, %p100
      %p102 = scmp.ne.s32.totalorder %s90, %s91
      %p103 = scmp.eq.s32.totalorder %s25, 7
      %p104 = por %p102, %p103
      %p106 = scmp.ne.s32.totalorder %s91, %s105
      %p107 = scmp.eq.s32.totalorder %s25, 0
      %p108 = por %p106, %p107
      %s110 = sadd.s32 %s109, 1
      %p113 = scmp.eq.s32.totalorder %s19, 7
      %p114 = scmp.ne.s32.totalorder %s109, %s111
      %p115 = scmp.eq.s32.totalorder %s19, 0
      %p116 = por %p114, %p115
      %p117 = scmp.ne.s32.totalorder %s109, %s111
      %p118 = scmp.eq.s32.totalorder %s24, 7
      %p119 = por %p117, %p118
      %p120 = scmp.ne.s32.totalorder %s111, %s112
      %p121 = scmp.eq.s32.totalorder %s24, 0
      %p122 = por %p120, %p121
      %p123 = scmp.ne.s32.totalorder %s111, %s112
      %p124 = scmp.eq.s32.totalorder %s25, 7
      %p125 = por %p123, %p124
      %p127 = scmp.ne.s32.totalorder %s112, %s126
      %p128 = scmp.eq.s32.totalorder %s25, 0
      %p129 = por %p127, %p128
      %s131 = sadd.s32 %s130, 1
      %p134 = scmp.eq.s32.totalorder %s19, 7
      %p135 = scmp.ne.s32.totalorder %s130, %s132
      %p136 = scmp.eq.s32.totalorder %s19, 0
      %p137 = por %p135, %p136
      %p138 = scmp.ne.s32.totalorder %s130, %s132
      %p139 = scmp.eq.s32.totalorder %s24, 7
      %p140 = por %p138, %p139
      %p141 = scmp.ne.s32.totalorder %s132, %s133
      %p142 = scmp.eq.s32.totalorder %s24, 0
      %p143 = por %p141, %p142
      %p144 = scmp.ne.s32.totalorder %s132, %s133
      %p145 = scmp.eq.s32.totalorder %s25, 7
      %p146 = por %p144, %p145
      %p148 = scmp.ne.s32.totalorder %s133, %s147
      %p149 = scmp.eq.s32.totalorder %s25, 0
      %p150 = por %p148, %p149
      %s152 = sadd.s32 %s151, 1
      %p155 = scmp.eq.s32.totalorder %s19, 7
      %p156 = scmp.ne.s32.totalorder %s151, %s153
      %p157 = scmp.eq.s32.totalorder %s19, 0
      %p158 = por %p156, %p157
      %p159 = scmp.ne.s32.totalorder %s151, %s153
      %p160 = scmp.eq.s32.totalorder %s24, 7
      %p161 = por %p159, %p160
      %p162 = scmp.ne.s32.totalorder %s153, %s154
      %p163 = scmp.eq.s32.totalorder %s24, 0
      %p164 = por %p162, %p163
      %p165 = scmp.ne.s32.totalorder %s153, %s154
      %p166 = scmp.eq.s32.totalorder %s25, 7
      %p167 = por %p165, %p166
      %p169 = scmp.ne.s32.totalorder %s154, %s168
      %p170 = scmp.eq.s32.totalorder %s25, 0
      %p171 = por %p169, %p170
      %s173 = sadd.s32 %s172, 1
      %p176 = scmp.eq.s32.totalorder %s19, 7
      %p177 = scmp.ne.s32.totalorder %s172, %s174
      %p178 = scmp.eq.s32.totalorder %s19, 0
      %p179 = por %p177, %p178
      %p180 = scmp.ne.s32.totalorder %s172, %s174
      %p181 = scmp.eq.s32.totalorder %s24, 7
      %p182 = por %p180, %p181
      %p183 = scmp.ne.s32.totalorder %s174, %s175
      %p184 = scmp.eq.s32.totalorder %s24, 0
      %p185 = por %p183, %p184
      %p186 = scmp.ne.s32.totalorder %s174, %s175
      %p187 = scmp.eq.s32.totalorder %s25, 7
      %p188 = por %p186, %p187
      %p190 = scmp.ne.s32.totalorder %s175, %s189
      %p191 = scmp.eq.s32.totalorder %s25, 0
      %p192 = por %p190, %p191
      %s193 = ssub.s32 %s26, %s38
      %p194 = scmp.eq.s32.totalorder %s193, 0
      %s196 = sadd.s32 %s195, 1
      %s197 = scalar_select %p194, %s195, %s196
      %p200 = pneg %p194
      %p201 = scmp.eq.s32.totalorder %s19, 7
      %p202 = por %p200, %p201
      %p203 = scmp.ne.s32.totalorder %s195, %s198
      %p204 = scmp.eq.s32.totalorder %s19, 0
      %p205 = por %p203, %p204
      %p206 = scmp.ne.s32.totalorder %s195, %s198
      %p207 = scmp.eq.s32.totalorder %s24, 7
      %p208 = por %p206, %p207
      %p209 = scmp.ne.s32.totalorder %s198, %s199
      %p210 = scmp.eq.s32.totalorder %s24, 0
      %p211 = por %p209, %p210
      %p212 = scmp.ne.s32.totalorder %s198, %s199
      %p213 = scmp.eq.s32.totalorder %s25, 7
      %p214 = por %p212, %p213
      %p216 = scmp.ne.s32.totalorder %s199, %s215
      %p217 = scmp.eq.s32.totalorder %s25, 0
      %p218 = por %p216, %p217
      %p219 = scmp.le.s32.totalorder 1, %s19
      %p220 = scmp.lt.s32.totalorder %s19, 9
      %p221 = pnand %p219, %p220
      %p222 = pneg %p221
      // Predicated region
      $region9: #{tpu_custom_call.1} parent=5 // pred_check
        _
      $region10: #{tpu_custom_call.1} parent=5 // pred_check_branch
        %224 = sbr.rel (%p221) target = $region12
      $region11: #{tpu_custom_call.1} parent=5 // pred_region
        %s225 = ssub.s32 %s19, 1
        // Predicated region
        $region13: #{tpu_custom_call.1} parent=11 // pred_check
          %p226 = pneg %p80
        $region14: #{tpu_custom_call.1} parent=11 // pred_check_branch
          %228 = sbr.rel (%p226) target = $region16
        $region15: #{tpu_custom_call.1} parent=11 // pred_region
          _
        $region16: #{tpu_custom_call.1} parent=11 // pred_fallthru
          _
        // Predicated region
        $region17: #{tpu_custom_call.1} parent=11 // pred_check
          %p229 = pneg %p101
        $region18: #{tpu_custom_call.1} parent=11 // pred_check_branch
          %231 = sbr.rel (%p229) target = $region20
        $region19: #{tpu_custom_call.1} parent=11 // pred_region
          _
        $region20: #{tpu_custom_call.1} parent=11 // pred_fallthru
          _
        // Predicated region
        $region21: #{tpu_custom_call.1} parent=11 // pred_check
          %p232 = pneg %p122
        $region22: #{tpu_custom_call.1} parent=11 // pred_check_branch
          %234 = sbr.rel (%p232) target = $region24
        $region23: #{tpu_custom_call.1} parent=11 // pred_region
          _
        $region24: #{tpu_custom_call.1} parent=11 // pred_fallthru
          _
        // Predicated region
        $region25: #{tpu_custom_call.1} parent=11 // pred_check
          %p235 = pneg %p143
        $region26: #{tpu_custom_call.1} parent=11 // pred_check_branch
          %237 = sbr.rel (%p235) target = $region28
        $region27: #{tpu_custom_call.1} parent=11 // pred_region
          _
        $region28: #{tpu_custom_call.1} parent=11 // pred_fallthru
          _
        // Predicated region
        $region29: #{tpu_custom_call.1} parent=11 // pred_check
          %p238 = pneg %p164
        $region30: #{tpu_custom_call.1} parent=11 // pred_check_branch
          %240 = sbr.rel (%p238) target = $region32
        $region31: #{tpu_custom_call.1} parent=11 // pred_region
          _
        $region32: #{tpu_custom_call.1} parent=11 // pred_fallthru
          _
        // Predicated region
        $region33: #{tpu_custom_call.1} parent=11 // pred_check
          %p241 = pneg %p185
        $region34: #{tpu_custom_call.1} parent=11 // pred_check_branch
          %243 = sbr.rel (%p241) target = $region36
        $region35: #{tpu_custom_call.1} parent=11 // pred_region
          _
        $region36: #{tpu_custom_call.1} parent=11 // pred_fallthru
          _
      $region12: #{tpu_custom_call.1} parent=5 // pred_fallthru
        _
      %p244 = scmp.lt.s32.totalorder %s19, 8
      // Predicated region
      $region37: #{tpu_custom_call.1} parent=5 // pred_check
        %p245 = pneg %p244
      $region38: #{tpu_custom_call.1} parent=5 // pred_check_branch
        %247 = sbr.rel (%p245) target = $region40
      $region39: #{tpu_custom_call.1} parent=5 // pred_region
        // Predicated region
        $region41: #{tpu_custom_call.1} parent=39 // pred_check
          %p248 = pneg %p53
        $region42: #{tpu_custom_call.1} parent=39 // pred_check_branch
          %250 = sbr.rel (%p248) target = $region44
        $region43: #{tpu_custom_call.1} parent=39 // pred_region
          %s251 = sand.u32 %s43, 1
          %s252 = scalar_lea.sflag [#allocation6], %s251
          %s253 = sand.u32 %s43, 1
          %s254 = smul.addr %s253, 64
          %s255 = scalar_lea.vmem [#allocation5], %s254
          %s256 = smul.u32 8, %s27
          %s258 = ssub.s32 1024, 1024
          %259 = vsyncadd %s252, %s258
          %s260 = smul.addr %s26, 32
          %s261 = sadd.s32 %s256, %s260
          %s262 = smul.addr %s261, 128
          %s263 = scalar_lea.hbm %s0, %s262
          %s264 = sshll.u32 %s255, 4
          %s265 = int_to_ptr.vmem [resolvable:$true] %s264
          %270 = dma.hbm_to_vmem [thread:$0]  %s263, 1024, %s265, %s252, 128, 128, 8
        $region44: #{tpu_custom_call.1} parent=39 // pred_fallthru
          _
      $region40: #{tpu_custom_call.1} parent=5 // pred_fallthru
        _
      %p271 = scmp.le.s32.totalorder 1, %s19
      %p272 = scmp.lt.s32.totalorder %s19, 9
      %p273 = pnand %p271, %p272
      %p274 = pneg %p273
      // Predicated region
      $region45: #{tpu_custom_call.1} parent=5 // pred_check
        _
      $region46: #{tpu_custom_call.1} parent=5 // pred_check_branch
        %276 = sbr.rel (%p273) target = $region48
      $region47: #{tpu_custom_call.1} parent=5 // pred_region
        %s277 = ssub.s32 %s19, 1
        %s278 = sand.u32 %s46, 1
        %s279 = scalar_lea.sflag [#allocation6], %s278
        %s280 = sand.u32 %s46, 1
        %s281 = smul.addr %s280, 64
        %s282 = scalar_lea.vmem [#allocation5], %s281
        // Predicated region
        $region49: #{tpu_custom_call.1} parent=47 // pred_check
          %p283 = pneg %p59
        $region50: #{tpu_custom_call.1} parent=47 // pred_check_branch
          %285 = sbr.rel (%p283) target = $region52
        $region51: #{tpu_custom_call.1} parent=47 // pred_region
          %286 = dma.done %s279, 1024
        $region52: #{tpu_custom_call.1} parent=47 // pred_fallthru
          _
        %s287 = sand.u32 %s46, 1
        %s288 = scalar_lea.sflag [#allocation6], %s287
        %s289 = sand.u32 %s46, 1
        %s290 = smul.addr %s289, 64
        %s291 = scalar_lea.vmem [#allocation5], %s290
        %p292 = pneg %p59
        %p293 = pneg %p56
        %p294 = pneg %p80
        %p295 = pneg %p77
        %p296 = pneg %p101
        %p297 = pneg %p98
        %p298 = pneg %p122
        %p299 = pneg %p119
        %p300 = pneg %p143
        %p301 = pneg %p140
        %p302 = pneg %p164
        %p303 = pneg %p161
        %p304 = pneg %p185
        %p305 = pneg %p182
        %p306 = pneg %p211
        %p307 = pneg %p208
        %s308 = sand.u32 %s198, 1
        %s309 = scalar_lea.sflag [#allocation7], %s308
        %s310 = sand.u32 %s198, 1
        %s311 = smul.addr %s310, 8
        %s312 = scalar_lea.vmem [#allocation8], %s311
        %s313 = smul.u32 8, %s29
        %p314 = scmp.eq.s32.totalorder %s29, 0
        // Predicated region
        $region53: #{tpu_custom_call.1} parent=47 // pred_check
          %p315 = pneg %p314
        $region54: #{tpu_custom_call.1} parent=47 // pred_check_branch
          %317 = sbr.rel (%p315) target = $region56
        $region55: #{tpu_custom_call.1} parent=47 // pred_region
          %vm318 = vcmask 57344
          %319 = vst.msk [vmem:[#allocation2] sm:$0x1] %vm318, -inf
          %320 = vst.msk [vmem:[#allocation3] sm:$0x1] %vm318, 0.0
          %321 = vst [vmem:[#allocation4] sm:$0xff] 0.0
        $region56: #{tpu_custom_call.1} parent=47 // pred_fallthru
          _
        %v322 = vld [vmem:[%s282] sm:$0xff]
        %v323 = vld [vmem:[%s282 + $0x8] sm:$0xff]
        %v324 = vld [vmem:[%s282 + $0x10] sm:$0xff]
        %v325 = vld [vmem:[%s282 + $0x18] sm:$0xff]
        %v326 = vld [vmem:[%s282 + $0x20] sm:$0xff]
        %v327 = vld [vmem:[%s282 + $0x28] sm:$0xff]
        %v328 = vld [vmem:[%s282 + $0x30] sm:$0xff]
        %v329 = vld [vmem:[%s282 + $0x38] sm:$0xff]
        %330 = vadd.xlane.f32.xlu0 %v322
        %v331 = vpop.xlane.xlu0 %330
        %332 = vadd.xlane.f32.xlu0 %v323
        %v333 = vpop.xlane.xlu0 %332
        %334 = vadd.xlane.f32.xlu0 %v324
        %v335 = vpop.xlane.xlu0 %334
        %336 = vadd.xlane.f32.xlu0 %v325
        %v337 = vpop.xlane.xlu0 %336
        %338 = vadd.xlane.f32.xlu0 %v326
        %v339 = vpop.xlane.xlu0 %338
        %340 = vadd.xlane.f32.xlu0 %v327
        %v341 = vpop.xlane.xlu0 %340
        %342 = vadd.xlane.f32.xlu0 %v328
        %v343 = vpop.xlane.xlu0 %342
        %344 = vadd.xlane.f32.xlu0 %v329
        %v345 = vpop.xlane.xlu0 %344
        %v346 = vmul.f32 %v322, %v322
        %v347 = vmul.f32 %v323, %v323
        %v348 = vmul.f32 %v324, %v324
        %v349 = vmul.f32 %v325, %v325
        %v350 = vmul.f32 %v326, %v326
        %v351 = vmul.f32 %v327, %v327
        %v352 = vmul.f32 %v328, %v328
        %v353 = vmul.f32 %v329, %v329
        %354 = vadd.xlane.f32.xlu0 %v346
        %v355 = vpop.xlane.xlu0 %354
        %356 = vadd.xlane.f32.xlu0 %v347
        %v357 = vpop.xlane.xlu0 %356
        %358 = vadd.xlane.f32.xlu0 %v348
        %v359 = vpop.xlane.xlu0 %358
        %360 = vadd.xlane.f32.xlu0 %v349
        %v361 = vpop.xlane.xlu0 %360
        %362 = vadd.xlane.f32.xlu0 %v350
        %v363 = vpop.xlane.xlu0 %362
        %364 = vadd.xlane.f32.xlu0 %v351
        %v365 = vpop.xlane.xlu0 %364
        %366 = vadd.xlane.f32.xlu0 %v352
        %v367 = vpop.xlane.xlu0 %366
        %368 = vadd.xlane.f32.xlu0 %v353
        %v369 = vpop.xlane.xlu0 %368
        %v370 = vmul.f32 %v331, 0.0625
        %v371 = vmul.f32 %v333, 0.0625
        %v372 = vmul.f32 %v335, 0.0625
        %v373 = vmul.f32 %v337, 0.0625
        %v374 = vmul.f32 %v339, 0.0625
        %v375 = vmul.f32 %v341, 0.0625
        %v376 = vmul.f32 %v343, 0.0625
        %v377 = vmul.f32 %v345, 0.0625
        %v378 = vmul.f32 %v355, 0.0625
        %v379 = vmul.f32 %v357, 0.0625
        %v380 = vmul.f32 %v359, 0.0625
        %v381 = vmul.f32 %v361, 0.0625
        %v382 = vmul.f32 %v363, 0.0625
        %v383 = vmul.f32 %v365, 0.0625
        %v384 = vmul.f32 %v367, 0.0625
        %v385 = vmul.f32 %v369, 0.0625
        %v386 = vmul.f32 %v370, %v370
        %v387 = vmul.f32 %v371, %v371
        %v388 = vmul.f32 %v372, %v372
        %v389 = vmul.f32 %v373, %v373
        %v390 = vmul.f32 %v374, %v374
        %v391 = vmul.f32 %v375, %v375
        %v392 = vmul.f32 %v376, %v376
        %v393 = vmul.f32 %v377, %v377
        %v394 = vsub.f32 %v378, %v386
        %v395 = vsub.f32 %v379, %v387
        %v396 = vsub.f32 %v380, %v388
        %v397 = vsub.f32 %v381, %v389
        %v398 = vsub.f32 %v382, %v390
        %v399 = vsub.f32 %v383, %v391
        %v400 = vsub.f32 %v384, %v392
        %v401 = vsub.f32 %v385, %v393
        %v402 = vmax.f32 %v394, 0.0
        %v403 = vmax.f32 %v395, 0.0
        %v404 = vmax.f32 %v396, 0.0
        %v405 = vmax.f32 %v397, 0.0
        %v406 = vmax.f32 %v398, 0.0
        %v407 = vmax.f32 %v399, 0.0
        %v408 = vmax.f32 %v400, 0.0
        %v409 = vmax.f32 %v401, 0.0
        %v410 = vsub.f32 %v322, %v370
        %v411 = vsub.f32 %v323, %v371
        %v412 = vsub.f32 %v324, %v372
        %v413 = vsub.f32 %v325, %v373
        %v414 = vsub.f32 %v326, %v374
        %v415 = vsub.f32 %v327, %v375
        %v416 = vsub.f32 %v328, %v376
        %v417 = vsub.f32 %v329, %v377
        %v418 = vadd.f32 %v402, 1e-06
        %v419 = vadd.f32 %v403, 1e-06
        %v420 = vadd.f32 %v404, 1e-06
        %v421 = vadd.f32 %v405, 1e-06
        %v422 = vadd.f32 %v406, 1e-06
        %v423 = vadd.f32 %v407, 1e-06
        %v424 = vadd.f32 %v408, 1e-06
        %v425 = vadd.f32 %v409, 1e-06
        %v426 = vrsqrt.pop %v418
        %v427 = vrsqrt.pop %v419
        %v428 = vrsqrt.pop %v420
        %v429 = vrsqrt.pop %v421
        %v430 = vrsqrt.pop %v422
        %v431 = vrsqrt.pop %v423
        %v432 = vrsqrt.pop %v424
        %v433 = vrsqrt.pop %v425
        %v434 = vmul.f32 %v410, %v426
        %v435 = vmul.f32 %v411, %v427
        %v436 = vmul.f32 %v412, %v428
        %v437 = vmul.f32 %v413, %v429
        %v438 = vmul.f32 %v414, %v430
        %v439 = vmul.f32 %v415, %v431
        %v440 = vmul.f32 %v416, %v432
        %v441 = vmul.f32 %v417, %v433
        %v442 = vld [vmem:[%s1] sm:$0x1]
        %v444 = vlaneseq
        %v445 = vshrl.u32 %v444, 7
        %v446 = vsub.s32 0, %v445
        %v447 = vrot.slane %v442, %v446
        %v449 = vmul.f32 %v434, %v447
        %v450 = vmul.f32 %v435, %v447
        %v451 = vmul.f32 %v436, %v447
        %v452 = vmul.f32 %v437, %v447
        %v453 = vmul.f32 %v438, %v447
        %v454 = vmul.f32 %v439, %v447
        %v455 = vmul.f32 %v440, %v447
        %v456 = vmul.f32 %v441, %v447
        %v457 = vld [vmem:[%s2] sm:$0x1]
        %v459 = vlaneseq
        %v460 = vshrl.u32 %v459, 7
        %v461 = vsub.s32 0, %v460
        %v462 = vrot.slane %v457, %v461
        %v464 = vadd.f32 %v449, %v462
        %v465 = vadd.f32 %v450, %v462
        %v466 = vadd.f32 %v451, %v462
        %v467 = vadd.f32 %v452, %v462
        %v468 = vadd.f32 %v453, %v462
        %v469 = vadd.f32 %v454, %v462
        %v470 = vadd.f32 %v455, %v462
        %v471 = vadd.f32 %v456, %v462
        %v472 = vld [vmem:[%s3] sm:$0xff]
        %v473 = vld [vmem:[%s3 + $0x8] sm:$0xff]
        %v474 = vld [vmem:[%s3 + $0x10] sm:$0xff]
        %v475 = vld [vmem:[%s3 + $0x18] sm:$0xff]
        %v476 = vld [vmem:[%s3 + $0x20] sm:$0xff]
        %v477 = vld [vmem:[%s3 + $0x28] sm:$0xff]
        %v478 = vld [vmem:[%s3 + $0x30] sm:$0xff]
        %v479 = vld [vmem:[%s3 + $0x38] sm:$0xff]
        %v480 = vld [vmem:[%s3 + $0x40] sm:$0xff]
        %v481 = vld [vmem:[%s3 + $0x48] sm:$0xff]
        %v482 = vld [vmem:[%s3 + $0x50] sm:$0xff]
        %v483 = vld [vmem:[%s3 + $0x58] sm:$0xff]
        %v484 = vld [vmem:[%s3 + $0x60] sm:$0xff]
        %v485 = vld [vmem:[%s3 + $0x68] sm:$0xff]
        %v486 = vld [vmem:[%s3 + $0x70] sm:$0xff]
        %v487 = vld [vmem:[%s3 + $0x78] sm:$0xff]
        %v488 = vld [vmem:[%s4] sm:$0x1]
        %v490 = vlaneseq
        %v491 = vshrl.u32 %v490, 7
        %v492 = vsub.s32 0, %v491
        %v493 = vrot.slane %v488, %v492
        %495 = vmatprep.subr.mxu0 0.0
        %496 = vmatpush1.msra.mxu0 %v472
        %497 = vmatprep.subr.mxu0 0.0
        %498 = vmatpush1.msra.mxu0 %v473
        %499 = vmatprep.subr.mxu0 0.0
        %500 = vmatpush1.msra.mxu0 %v474
        %501 = vmatprep.subr.mxu0 0.0
        %502 = vmatpush1.msra.mxu0 %v475
        %503 = vmatprep.subr.mxu0 0.0
        %504 = vmatpush1.msra.mxu0 %v476
        %505 = vmatprep.subr.mxu0 0.0
        %506 = vmatpush1.msra.mxu0 %v477
        %507 = vmatprep.subr.mxu0 0.0
        %508 = vmatpush1.msra.mxu0 %v478
        %509 = vmatprep.subr.mxu0 0.0
        %510 = vmatpush1.msra.mxu0 %v479
        %511 = vmatprep.subr.mxu0 0.0
        %512 = vmatpush1.msra.mxu0 %v480
        %513 = vmatprep.subr.mxu0 0.0
        %514 = vmatpush1.msra.mxu0 %v481
        %515 = vmatprep.subr.mxu0 0.0
        %516 = vmatpush1.msra.mxu0 %v482
        %517 = vmatprep.subr.mxu0 0.0
        %518 = vmatpush1.msra.mxu0 %v483
        %519 = vmatprep.subr.mxu0 0.0
        %520 = vmatpush1.msra.mxu0 %v484
        %521 = vmatprep.subr.mxu0 0.0
        %522 = vmatpush1.msra.mxu0 %v485
        %523 = vmatprep.subr.mxu0 0.0
        %524 = vmatpush1.msra.mxu0 %v486
        %525 = vmatprep.subr.mxu0 0.0
        %526 = vmatpush1.msra.mxu0 %v487
        %527 = vmatprep.subr.mxu0 0.0
        %528 = vmatpush1.msra.mxu0 0.0
        %529 = vmatprep.subr.mxu0 0.0
        %530 = vmatpush1.msra.mxu0 0.0
        %531 = vmatprep.subr.mxu0 0.0
        %532 = vmatpush1.msra.mxu0 0.0
        %533 = vmatprep.subr.mxu0 0.0
        %534 = vmatpush1.msra.mxu0 0.0
        %535 = vmatprep.subr.mxu0 0.0
        %536 = vmatpush1.msra.mxu0 0.0
        %537 = vmatprep.subr.mxu0 0.0
        %538 = vmatpush1.msra.mxu0 0.0
        %539 = vmatprep.subr.mxu0 0.0
        %540 = vmatpush1.msra.mxu0 0.0
        %541 = vmatprep.subr.mxu0 0.0
        %542 = vmatpush1.msra.mxu0 0.0
        %543 = vmatprep.subr.mxu0 0.0
        %544 = vmatpush1.msra.mxu0 0.0
        %545 = vmatprep.subr.mxu0 0.0
        %546 = vmatpush1.msra.mxu0 0.0
        %547 = vmatprep.subr.mxu0 0.0
        %548 = vmatpush1.msra.mxu0 0.0
        %549 = vmatprep.subr.mxu0 0.0
        %550 = vmatpush1.msra.mxu0 0.0
        %551 = vmatprep.subr.mxu0 0.0
        %552 = vmatpush1.msra.mxu0 0.0
        %553 = vmatprep.subr.mxu0 0.0
        %554 = vmatpush1.msra.mxu0 0.0
        %555 = vmatprep.subr.mxu0 0.0
        %556 = vmatpush1.msra.mxu0 0.0
        %557 = vmatprep.subr.mxu0 0.0
        %558 = vmatpush1.msra.mxu0 0.0
        %559 = vmatprep.mubr.f32.mxu0 0.0
        %560 = vmatmul.mubr.f32.gmra.mrb[0].mxu0 %v464
        %v561 = vpop.f32.mrb[0].mxu0
        %v562 = vadd.f32 %v493, %v561
        %v563 = vpop.f32.mrb[0].mxu0
        %564 = vmatprep.mubr.f32.mxu0 0.0
        %565 = vmatmul.mubr.f32.gmra.mrb[0].mxu0 %v465
        %v566 = vpop.f32.mrb[0].mxu0
        %v567 = vadd.f32 %v493, %v566
        %v568 = vpop.f32.mrb[0].mxu0
        %569 = vmatprep.mubr.f32.mxu0 0.0
        %570 = vmatmul.mubr.f32.gmra.mrb[0].mxu0 %v466
        %v571 = vpop.f32.mrb[0].mxu0
        %v572 = vadd.f32 %v493, %v571
        %v573 = vpop.f32.mrb[0].mxu0
        %574 = vmatprep.mubr.f32.mxu0 0.0
        %575 = vmatmul.mubr.f32.gmra.mrb[0].mxu0 %v467
        %v576 = vpop.f32.mrb[0].mxu0
        %v577 = vadd.f32 %v493, %v576
        %v578 = vpop.f32.mrb[0].mxu0
        %579 = vmatprep.mubr.f32.mxu0 0.0
        %580 = vmatmul.mubr.f32.gmra.mrb[0].mxu0 %v468
        %v581 = vpop.f32.mrb[0].mxu0
        %v582 = vadd.f32 %v493, %v581
        %v583 = vpop.f32.mrb[0].mxu0
        %584 = vmatprep.mubr.f32.mxu0 0.0
        %585 = vmatmul.mubr.f32.gmra.mrb[0].mxu0 %v469
        %v586 = vpop.f32.mrb[0].mxu0
        %v587 = vadd.f32 %v493, %v586
        %v588 = vpop.f32.mrb[0].mxu0
        %589 = vmatprep.mubr.f32.mxu0 0.0
        %590 = vmatmul.mubr.f32.gmra.mrb[0].mxu0 %v470
        %v591 = vpop.f32.mrb[0].mxu0
        %v592 = vadd.f32 %v493, %v591
        %v593 = vpop.f32.mrb[0].mxu0
        %594 = vmatprep.mubr.f32.mxu0 0.0
        %595 = vmatmul.mubr.f32.gmra.mrb[0].mxu0 %v471
        %v596 = vpop.f32.mrb[0].mxu0
        %v597 = vadd.f32 %v493, %v596
        %v598 = vpop.f32.mrb[0].mxu0
        %599 = vdwg.mxu0
        %v600 = vmul.f32 %v562, 0.044715
        %v601 = vmul.f32 %v567, 0.044715
        %v602 = vmul.f32 %v572, 0.044715
        %v603 = vmul.f32 %v577, 0.044715
        %v604 = vmul.f32 %v582, 0.044715
        %v605 = vmul.f32 %v587, 0.044715
        %v606 = vmul.f32 %v592, 0.044715
        %v607 = vmul.f32 %v597, 0.044715
        %v608 = vmul.f32 %v600, %v562
        %v609 = vmul.f32 %v601, %v567
        %v610 = vmul.f32 %v602, %v572
        %v611 = vmul.f32 %v603, %v577
        %v612 = vmul.f32 %v604, %v582
        %v613 = vmul.f32 %v605, %v587
        %v614 = vmul.f32 %v606, %v592
        %v615 = vmul.f32 %v607, %v597
        %v616 = vmul.f32 %v608, %v562
        %v617 = vmul.f32 %v609, %v567
        %v618 = vmul.f32 %v610, %v572
        %v619 = vmul.f32 %v611, %v577
        %v620 = vmul.f32 %v612, %v582
        %v621 = vmul.f32 %v613, %v587
        %v622 = vmul.f32 %v614, %v592
        %v623 = vmul.f32 %v615, %v597
        %v624 = vadd.f32 %v562, %v616
        %v625 = vadd.f32 %v567, %v617
        %v626 = vadd.f32 %v572, %v618
        %v627 = vadd.f32 %v577, %v619
        %v628 = vadd.f32 %v582, %v620
        %v629 = vadd.f32 %v587, %v621
        %v630 = vadd.f32 %v592, %v622
        %v631 = vadd.f32 %v597, %v623
        %v632 = vmul.f32 %v624, 0.7978846
        %v633 = vmul.f32 %v625, 0.7978846
        %v634 = vmul.f32 %v626, 0.7978846
        %v635 = vmul.f32 %v627, 0.7978846
        %v636 = vmul.f32 %v628, 0.7978846
        %v637 = vmul.f32 %v629, 0.7978846
        %v638 = vmul.f32 %v630, 0.7978846
        %v639 = vmul.f32 %v631, 0.7978846
        %v640 = vtanh.pop %v632
        %v641 = vtanh.pop %v633
        %v642 = vtanh.pop %v634
        %v643 = vtanh.pop %v635
        %v644 = vtanh.pop %v636
        %v645 = vtanh.pop %v637
        %v646 = vtanh.pop %v638
        %v647 = vtanh.pop %v639
        %v648 = vmul.f32 %v562, 0.5
        %v649 = vmul.f32 %v567, 0.5
        %v650 = vmul.f32 %v572, 0.5
        %v651 = vmul.f32 %v577, 0.5
        %v652 = vmul.f32 %v582, 0.5
        %v653 = vmul.f32 %v587, 0.5
        %v654 = vmul.f32 %v592, 0.5
        %v655 = vmul.f32 %v597, 0.5
        %v656 = vadd.f32 %v640, 1.0
        %v657 = vadd.f32 %v641, 1.0
        %v658 = vadd.f32 %v642, 1.0
        %v659 = vadd.f32 %v643, 1.0
        %v660 = vadd.f32 %v644, 1.0
        %v661 = vadd.f32 %v645, 1.0
        %v662 = vadd.f32 %v646, 1.0
        %v663 = vadd.f32 %v647, 1.0
        %v664 = vmul.f32 %v648, %v656
        %v665 = vmul.f32 %v649, %v657
        %v666 = vmul.f32 %v650, %v658
        %v667 = vmul.f32 %v651, %v659
        %v668 = vmul.f32 %v652, %v660
        %v669 = vmul.f32 %v653, %v661
        %v670 = vmul.f32 %v654, %v662
        %v671 = vmul.f32 %v655, %v663
        %v672 = vld [vmem:[%s5] sm:$0xff]
        %v673 = vld [vmem:[%s5 + $0x8] sm:$0xff]
        %v674 = vld [vmem:[%s5 + $0x10] sm:$0xff]
        %v675 = vld [vmem:[%s5 + $0x18] sm:$0xff]
        %v676 = vld [vmem:[%s6] sm:$0x1]
        %v678 = vlaneseq
        %v679 = vshrl.u32 %v678, 7
        %v680 = vsub.s32 0, %v679
        %v681 = vrot.slane %v676, %v680
        %vm683 = vcmask 261120
        %v685 = vsel %vm683, %v664, 0
        %v688 = vsel %vm683, %v665, 0
        %v691 = vsel %vm683, %v666, 0
        %v694 = vsel %vm683, %v667, 0
        %v697 = vsel %vm683, %v668, 0
        %v700 = vsel %vm683, %v669, 0
        %v703 = vsel %vm683, %v670, 0
        %v706 = vsel %vm683, %v671, 0
        %708 = vmatprep.subr.mxu0 0.0
        %709 = vmatpush1.msra.mxu0 %v672
        %710 = vmatprep.subr.mxu0 0.0
        %711 = vmatpush1.msra.mxu0 %v673
        %712 = vmatprep.subr.mxu0 0.0
        %713 = vmatpush1.msra.mxu0 %v674
        %714 = vmatprep.subr.mxu0 0.0
        %715 = vmatpush1.msra.mxu0 %v675
        %716 = vmatprep.subr.mxu0 0.0
        %717 = vmatpush1.msra.mxu0 0.0
        %718 = vmatprep.subr.mxu0 0.0
        %719 = vmatpush1.msra.mxu0 0.0
        %720 = vmatprep.subr.mxu0 0.0
        %721 = vmatpush1.msra.mxu0 0.0
        %722 = vmatprep.subr.mxu0 0.0
        %723 = vmatpush1.msra.mxu0 0.0
        %724 = vmatprep.subr.mxu0 0.0
        %725 = vmatpush1.msra.mxu0 0.0
        %726 = vmatprep.subr.mxu0 0.0
        %727 = vmatpush1.msra.mxu0 0.0
        %728 = vmatprep.subr.mxu0 0.0
        %729 = vmatpush1.msra.mxu0 0.0
        %730 = vmatprep.subr.mxu0 0.0
        %731 = vmatpush1.msra.mxu0 0.0
        %732 = vmatprep.subr.mxu0 0.0
        %733 = vmatpush1.msra.mxu0 0.0
        %734 = vmatprep.subr.mxu0 0.0
        %735 = vmatpush1.msra.mxu0 0.0
        %736 = vmatprep.subr.mxu0 0.0
        %737 = vmatpush1.msra.mxu0 0.0
        %738 = vmatprep.subr.mxu0 0.0
        %739 = vmatpush1.msra.mxu0 0.0
        %740 = vmatprep.subr.mxu0 0.0
        %741 = vmatpush1.msra.mxu0 0.0
        %742 = vmatprep.subr.mxu0 0.0
        %743 = vmatpush1.msra.mxu0 0.0
        %744 = vmatprep.subr.mxu0 0.0
        %745 = vmatpush1.msra.mxu0 0.0
        %746 = vmatprep.subr.mxu0 0.0
        %747 = vmatpush1.msra.mxu0 0.0
        %748 = vmatprep.subr.mxu0 0.0
        %749 = vmatpush1.msra.mxu0 0.0
        %750 = vmatprep.subr.mxu0 0.0
        %751 = vmatpush1.msra.mxu0 0.0
        %752 = vmatprep.subr.mxu0 0.0
        %753 = vmatpush1.msra.mxu0 0.0
        %754 = vmatprep.subr.mxu0 0.0
        %755 = vmatpush1.msra.mxu0 0.0
        %756 = vmatprep.subr.mxu0 0.0
        %757 = vmatpush1.msra.mxu0 0.0
        %758 = vmatprep.subr.mxu0 0.0
        %759 = vmatpush1.msra.mxu0 0.0
        %760 = vmatprep.subr.mxu0 0.0
        %761 = vmatpush1.msra.mxu0 0.0
        %762 = vmatprep.subr.mxu0 0.0
        %763 = vmatpush1.msra.mxu0 0.0
        %764 = vmatprep.subr.mxu0 0.0
        %765 = vmatpush1.msra.mxu0 0.0
        %766 = vmatprep.subr.mxu0 0.0
        %767 = vmatpush1.msra.mxu0 0.0
        %768 = vmatprep.subr.mxu0 0.0
        %769 = vmatpush1.msra.mxu0 0.0
        %770 = vmatprep.subr.mxu0 0.0
        %771 = vmatpush1.msra.mxu0 0.0
        %772 = vmatprep.mubr.f32.mxu0 0.0
        %773 = vmatmul.mubr.f32.gmra.mrb[0].mxu0 %v685
        %v774 = vpop.f32.mrb[0].mxu0
        %v775 = vadd.f32 %v681, %v774
        %v776 = vpop.f32.mrb[0].mxu0
        %777 = vmatprep.mubr.f32.mxu0 0.0
        %778 = vmatmul.mubr.f32.gmra.mrb[0].mxu0 %v688
        %v779 = vpop.f32.mrb[0].mxu0
        %v780 = vadd.f32 %v681, %v779
        %v781 = vpop.f32.mrb[0].mxu0
        %782 = vmatprep.mubr.f32.mxu0 0.0
        %783 = vmatmul.mubr.f32.gmra.mrb[0].mxu0 %v691
        %v784 = vpop.f32.mrb[0].mxu0
        %v785 = vadd.f32 %v681, %v784
        %v786 = vpop.f32.mrb[0].mxu0
        %787 = vmatprep.mubr.f32.mxu0 0.0
        %788 = vmatmul.mubr.f32.gmra.mrb[0].mxu0 %v694
        %v789 = vpop.f32.mrb[0].mxu0
        %v790 = vadd.f32 %v681, %v789
        %v791 = vpop.f32.mrb[0].mxu0
        %792 = vmatprep.mubr.f32.mxu0 0.0
        %793 = vmatmul.mubr.f32.gmra.mrb[0].mxu0 %v697
        %v794 = vpop.f32.mrb[0].mxu0
        %v795 = vadd.f32 %v681, %v794
        %v796 = vpop.f32.mrb[0].mxu0
        %797 = vmatprep.mubr.f32.mxu0 0.0
        %798 = vmatmul.mubr.f32.gmra.mrb[0].mxu0 %v700
        %v799 = vpop.f32.mrb[0].mxu0
        %v800 = vadd.f32 %v681, %v799
        %v801 = vpop.f32.mrb[0].mxu0
        %802 = vmatprep.mubr.f32.mxu0 0.0
        %803 = vmatmul.mubr.f32.gmra.mrb[0].mxu0 %v703
        %v804 = vpop.f32.mrb[0].mxu0
        %v805 = vadd.f32 %v681, %v804
        %v806 = vpop.f32.mrb[0].mxu0
        %807 = vmatprep.mubr.f32.mxu0 0.0
        %808 = vmatmul.mubr.f32.gmra.mrb[0].mxu0 %v706
        %v809 = vpop.f32.mrb[0].mxu0
        %v810 = vadd.f32 %v681, %v809
        %v811 = vpop.f32.mrb[0].mxu0
        %812 = vdwg.mxu0
        %v813 = vld [vmem:[#allocation2] sm:$0x1]
        %vm814 = vcmask 64512
        %v815 = vsel %vm814, %v775, -inf
        %v816 = vsel %vm814, %v780, -inf
        %v817 = vsel %vm814, %v785, -inf
        %v818 = vsel %vm814, %v790, -inf
        %v819 = vsel %vm814, %v795, -inf
        %v820 = vmax.f32 %v815, %v819
        %v821 = vsel %vm814, %v800, -inf
        %v822 = vmax.f32 %v816, %v821
        %v823 = vsel %vm814, %v805, -inf
        %v824 = vmax.f32 %v817, %v823
        %v825 = vsel %vm814, %v810, -inf
        %v826 = vmax.f32 %v818, %v825
        %v827 = vmax.f32 %v820, %v822
        %v828 = vmax.f32 %v824, %v826
        %v829 = vmax.f32 %v827, %v828
        %v830 = vrot.slane %v829, 4
        %v831 = vmax.f32 %v829, %v830
        %v832 = vrot.slane %v831, 2
        %v833 = vmax.f32 %v831, %v832
        %v834 = vrot.slane %v833, 1
        %v835 = vmax.f32 %v833, %v834
        %v836 = vmax.f32 %v813, %v835
        %v837 = vsub.f32 %v813, %v836
        %v838 = vmul.f32 %v837, 1.442695
        %v839 = vpow.pop %v838
        %v841 = vlaneseq
        %v842 = vshrl.u32 %v841, 7
        %v843 = vsub.s32 0, %v842
        %v844 = vrot.slane %v836, %v843
        %v846 = vsub.f32 %v775, %v844
        %v847 = vsub.f32 %v780, %v844
        %v848 = vsub.f32 %v785, %v844
        %v849 = vsub.f32 %v790, %v844
        %v850 = vsub.f32 %v795, %v844
        %v851 = vsub.f32 %v800, %v844
        %v852 = vsub.f32 %v805, %v844
        %v853 = vsub.f32 %v810, %v844
        %v854 = vmul.f32 %v846, 1.442695
        %v855 = vpow.pop %v854
        %v856 = vmul.f32 %v847, 1.442695
        %v857 = vpow.pop %v856
        %v858 = vmul.f32 %v848, 1.442695
        %v859 = vpow.pop %v858
        %v860 = vmul.f32 %v849, 1.442695
        %v861 = vpow.pop %v860
        %v862 = vmul.f32 %v850, 1.442695
        %v863 = vpow.pop %v862
        %v864 = vmul.f32 %v851, 1.442695
        %v865 = vpow.pop %v864
        %v866 = vmul.f32 %v852, 1.442695
        %v867 = vpow.pop %v866
        %v868 = vmul.f32 %v853, 1.442695
        %v869 = vpow.pop %v868
        %v870 = vld [vmem:[#allocation3] sm:$0x1]
        %v871 = vmul.f32 %v839, %v870
        %v872 = vsel %vm814, %v855, 0.0
        %v873 = vsel %vm814, %v857, 0.0
        %v874 = vadd.f32 %v872, %v873
        %v875 = vsel %vm814, %v859, 0.0
        %v876 = vadd.f32 %v874, %v875
        %v877 = vsel %vm814, %v861, 0.0
        %v878 = vadd.f32 %v876, %v877
        %v879 = vsel %vm814, %v863, 0.0
        %v880 = vadd.f32 %v878, %v879
        %v881 = vsel %vm814, %v865, 0.0
        %v882 = vadd.f32 %v880, %v881
        %v883 = vsel %vm814, %v867, 0.0
        %v884 = vadd.f32 %v882, %v883
        %v885 = vsel %vm814, %v869, 0.0
        %v886 = vadd.f32 %v884, %v885
        %v887 = vrot.slane %v886, 4
        %v888 = vadd.f32 %v886, %v887
        %v889 = vrot.slane %v888, 2
        %v890 = vadd.f32 %v888, %v889
        %v891 = vrot.slane %v890, 1
        %v892 = vadd.f32 %v890, %v891
        %v893 = vadd.f32 %v871, %v892
        %vm894 = vcmask 57344
        %895 = vst.msk [vmem:[#allocation3] sm:$0x1] %vm894, %v893
        %896 = vxpose.xlu0.b32.start [1/16] %v855, 128
        %897 = vxpose.xlu0.b32.cont [2/16] %v857, 128
        %898 = vxpose.xlu0.b32.cont [3/16] %v859, 128
        %899 = vxpose.xlu0.b32.cont [4/16] %v861, 128
        %900 = vxpose.xlu0.b32.cont [5/16] %v863, 128
        %901 = vxpose.xlu0.b32.cont [6/16] %v865, 128
        %902 = vxpose.xlu0.b32.cont [7/16] %v867, 128
        %903 = vxpose.xlu0.b32.cont [8/16] %v869, 128
        %904 = vxpose.xlu0.b32.cont [9/16] 0.0, 128
        %905 = vxpose.xlu0.b32.cont [10/16] 0.0, 128
        %906 = vxpose.xlu0.b32.cont [11/16] 0.0, 128
        %907 = vxpose.xlu0.b32.cont [12/16] 0.0, 128
        %908 = vxpose.xlu0.b32.cont [13/16] 0.0, 128
        %909 = vxpose.xlu0.b32.cont [14/16] 0.0, 128
        %910 = vxpose.xlu0.b32.cont [15/16] 0.0, 128
        %911 = vxpose.xlu0.b32.end [16/16] 0.0, 128
        %v912 = vpop.trf.xlu0
        %v913 = vpop.trf.xlu0
        %v914 = vpop.trf.xlu0
        %v915 = vpop.trf.xlu0
        %v916 = vpop.trf.xlu0
        %v917 = vpop.trf.xlu0
        %v918 = vpop.trf.xlu0
        %v919 = vpop.trf.xlu0
        %v920 = vpop.trf.xlu0
        %v921 = vpop.trf.xlu0
        %v922 = vpop.trf.xlu0
        %v923 = vpop.trf.xlu0
        %v924 = vpop.trf.xlu0
        %v925 = vpop.trf.xlu0
        %v926 = vpop.trf.xlu0
        %v927 = vpop.trf.xlu0
        %vm928 = vcmask 523264
        %v930 = vsel %vm928, %v912, 0
        %932 = vmatprep.subr.mxu0 0.0
        %933 = vmatpush1.msra.mxu0 %v322
        %934 = vmatprep.subr.mxu0 0.0
        %935 = vmatpush1.msra.mxu0 %v323
        %936 = vmatprep.subr.mxu0 0.0
        %937 = vmatpush1.msra.mxu0 %v324
        %938 = vmatprep.subr.mxu0 0.0
        %939 = vmatpush1.msra.mxu0 %v325
        %940 = vmatprep.subr.mxu0 0.0
        %941 = vmatpush1.msra.mxu0 %v326
        %942 = vmatprep.subr.mxu0 0.0
        %943 = vmatpush1.msra.mxu0 %v327
        %944 = vmatprep.subr.mxu0 0.0
        %945 = vmatpush1.msra.mxu0 %v328
        %946 = vmatprep.subr.mxu0 0.0
        %947 = vmatpush1.msra.mxu0 %v329
        %948 = vmatprep.subr.mxu0 0.0
        %949 = vmatpush1.msra.mxu0 0.0
        %950 = vmatprep.subr.mxu0 0.0
        %951 = vmatpush1.msra.mxu0 0.0
        %952 = vmatprep.subr.mxu0 0.0
        %953 = vmatpush1.msra.mxu0 0.0
        %954 = vmatprep.subr.mxu0 0.0
        %955 = vmatpush1.msra.mxu0 0.0
        %956 = vmatprep.subr.mxu0 0.0
        %957 = vmatpush1.msra.mxu0 0.0
        %958 = vmatprep.subr.mxu0 0.0
        %959 = vmatpush1.msra.mxu0 0.0
        %960 = vmatprep.subr.mxu0 0.0
        %961 = vmatpush1.msra.mxu0 0.0
        %962 = vmatprep.subr.mxu0 0.0
        %963 = vmatpush1.msra.mxu0 0.0
        %964 = vmatprep.subr.mxu0 0.0
        %965 = vmatpush1.msra.mxu0 0.0
        %966 = vmatprep.subr.mxu0 0.0
        %967 = vmatpush1.msra.mxu0 0.0
        %968 = vmatprep.subr.mxu0 0.0
        %969 = vmatpush1.msra.mxu0 0.0
        %970 = vmatprep.subr.mxu0 0.0
        %971 = vmatpush1.msra.mxu0 0.0
        %972 = vmatprep.subr.mxu0 0.0
        %973 = vmatpush1.msra.mxu0 0.0
        %974 = vmatprep.subr.mxu0 0.0
        %975 = vmatpush1.msra.mxu0 0.0
        %976 = vmatprep.subr.mxu0 0.0
        %977 = vmatpush1.msra.mxu0 0.0
        %978 = vmatprep.subr.mxu0 0.0
        %979 = vmatpush1.msra.mxu0 0.0
        %980 = vmatprep.subr.mxu0 0.0
        %981 = vmatpush1.msra.mxu0 0.0
        %982 = vmatprep.subr.mxu0 0.0
        %983 = vmatpush1.msra.mxu0 0.0
        %984 = vmatprep.subr.mxu0 0.0
        %985 = vmatpush1.msra.mxu0 0.0
        %986 = vmatprep.subr.mxu0 0.0
        %987 = vmatpush1.msra.mxu0 0.0
        %988 = vmatprep.subr.mxu0 0.0
        %989 = vmatpush1.msra.mxu0 0.0
        %990 = vmatprep.subr.mxu0 0.0
        %991 = vmatpush1.msra.mxu0 0.0
        %992 = vmatprep.subr.mxu0 0.0
        %993 = vmatpush1.msra.mxu0 0.0
        %994 = vmatprep.subr.mxu0 0.0
        %995 = vmatpush1.msra.mxu0 0.0
        %996 = vmatprep.mubr.f32.mxu0 0.0
        %997 = vmatmul.mubr.f32.gmra.mrb[0].mxu0 %v930
        %v998 = vpop.f32.mrb[0].mxu0
        %v999 = vadd.f32 0.0, %v998
        %v1000 = vpop.f32.mrb[0].mxu0
        %1001 = vdwg.mxu0
        %v1002 = vlaneseq
        %v1003 = vshrl.u32 %v1002, 7
        %v1004 = vlaneseq
        %v1005 = vand.u32 %v1004, 127
        %vm1006 = vcmp.eq.s32.totalorder %v1003, %v1005
        %v1008 = vlaneseq
        %v1009 = vshrl.u32 %v1008, 7
        %v1010 = vsub.s32 0, %v1009
        %v1011 = vrot.slane %v839, %v1010
        %v1013 = vsel %vm1006, %v1011, 0.0
        %v1014 = vsel %vm814, %v1013, 0.0
        %1015 = vadd.xlane.f32.xlu0 %v1014
        %v1016 = vpop.xlane.xlu0 %1015
        %v1017 = vld [vmem:[#allocation4] sm:$0xff]
        %v1018 = vmul.f32 %v1016, %v1017
        %v1019 = vadd.f32 %v1018, %v999
        %1020 = vst [vmem:[#allocation4] sm:$0xff] %v1019
        %1021 = vst.msk [vmem:[#allocation2] sm:$0x1] %vm894, %v836
        %p1022 = scmp.eq.s32.totalorder %s29, 3
        // Predicated region
        $region57: #{tpu_custom_call.1} parent=47 // pred_check
          %p1023 = pneg %p1022
        $region58: #{tpu_custom_call.1} parent=47 // pred_check_branch
          %1025 = sbr.rel (%p1023) target = $region60
        $region59: #{tpu_custom_call.1} parent=47 // pred_region
          %v1026 = vld [vmem:[#allocation3] sm:$0x1]
          %v1027 = vrcp.pop %v1026
          %v1028 = vmul.f32 1.0, %v1027
          %v1029 = vld [vmem:[#allocation4] sm:$0xff]
          %v1031 = vlaneseq
          %v1032 = vshrl.u32 %v1031, 7
          %v1033 = vsub.s32 0, %v1032
          %v1034 = vrot.slane %v1028, %v1033
          %v1036 = vsel %vm1006, %v1034, 0.0
          %v1037 = vsel %vm814, %v1036, 0.0
          %1038 = vadd.xlane.f32.xlu0 %v1037
          %v1039 = vpop.xlane.xlu0 %1038
          %v1040 = vmul.f32 %v1029, %v1039
          %1041 = vst [vmem:[%s312] sm:$0xff] %v1040
        $region60: #{tpu_custom_call.1} parent=47 // pred_fallthru
          _
        %s1042 = sand.u32 %s198, 1
        %s1043 = scalar_lea.sflag [#allocation7], %s1042
        %s1044 = sand.u32 %s198, 1
        %s1045 = smul.addr %s1044, 8
        %s1046 = scalar_lea.vmem [#allocation8], %s1045
        // Predicated region
        $region61: #{tpu_custom_call.1} parent=47 // pred_check
          %p1047 = pneg %p208
        $region62: #{tpu_custom_call.1} parent=47 // pred_check_branch
          %1049 = sbr.rel (%p1047) target = $region64
        $region63: #{tpu_custom_call.1} parent=47 // pred_region
          %s1051 = ssub.s32 128, 128
          %1052 = vsyncadd %s1043, %s1051
          %s1053 = smul.addr %s28, 128
          %s1054 = scalar_lea.hbm %s7, %s1053
          %s1056 = sshll.u32 %s1046, 4
          %s1057 = int_to_ptr.vmem [resolvable:$true] %s1056
          %1059 = dma.vmem_to_hbm [thread:$0]  %s1057, 128, %s1054, %s1043
        $region64: #{tpu_custom_call.1} parent=47 // pred_fallthru
          _
      $region48: #{tpu_custom_call.1} parent=5 // pred_fallthru
        _
      %p1060 = scmp.le.s32.totalorder 2, %s19
      // Predicated region
      $region65: #{tpu_custom_call.1} parent=5 // pred_check
        %p1061 = pneg %p1060
      $region66: #{tpu_custom_call.1} parent=5 // pred_check_branch
        %1063 = sbr.rel (%p1061) target = $region68
      $region67: #{tpu_custom_call.1} parent=5 // pred_region
        %s1064 = ssub.s32 %s19, 2
        // Predicated region
        $region69: #{tpu_custom_call.1} parent=67 // pred_check
          %p1065 = pneg %p214
        $region70: #{tpu_custom_call.1} parent=67 // pred_check_branch
          %1067 = sbr.rel (%p1065) target = $region72
        $region71: #{tpu_custom_call.1} parent=67 // pred_region
          %s1068 = sand.u32 %s199, 1
          %s1069 = scalar_lea.sflag [#allocation7], %s1068
          %s1070 = sand.u32 %s199, 1
          %s1071 = smul.addr %s1070, 8
          %s1072 = scalar_lea.vmem [#allocation8], %s1071
          %1073 = dma.done %s1069, 128
        $region72: #{tpu_custom_call.1} parent=67 // pred_fallthru
          _
      $region68: #{tpu_custom_call.1} parent=5 // pred_fallthru
        _
    $region6: #{tpu_custom_call.1} parent=1 // loop_footer
      %s23 = sadd.s32 1, %s19
    $region7: #{tpu_custom_call.1} parent=1 // loop_footer_branch
      %18 = sbr.rel target = $region3
    $region8: #{tpu_custom_call.1} parent=1 // loop_exit
      _
    %1074 = vsyncpa [#allocation6], 1
    %s1075 = scalar_lea.sflag [#allocation6], 1
    %1076 = vsyncpa %s1075, 1
    %1077 = vsyncpa [#allocation7], 1
    %s1078 = scalar_lea.sflag [#allocation7], 1
    %1079 = vsyncpa %s1078, 1

</llo_original>
